<compile_context>
chip_gen: v5e
topology: v5e:2x2
jax: 0.10.0
libtpu: 0.0.40
codegen_flags: <defaults>
</compile_context>

<pallas_src>
from typing import NamedTuple

import jax
import jax.numpy as jnp
from jax.experimental import pallas as pl
from jax.experimental.pallas import tpu as pltpu

LANE = 128
_NEG_INF = -1e30            # softmax mask value for padded vocab columns
_FUSED_VOCAB_MAX = 2048     # largest padded vocab handled by the single-tile kernel
_DEFAULT_VOCAB_TILE = 512   # default vocab tile for the two-pass kernel


def _round_up(n, m):
    return ((n + m - 1) // m) * m


def _pad_axis(a, axis, mult, value=0.0):
    pad = (-a.shape[axis]) % mult
    if pad == 0:
        return a
    widths = [(0, 0)] * a.ndim
    widths[axis] = (0, pad)
    return jnp.pad(a, widths, constant_values=value)


class PreparedParams(NamedTuple):
    weights: tuple       # (w1, b1, w2, b2, w3, b3) padded / cast
    vocab_size: int      # original (unpadded) vocab size
    input_dim: int       # original flattened input dim (context_size * embedding_dim)


def prepare_params(params, *, compute_dtype=jnp.float32):
    """One-time pad + cast of weights/biases (hoisted out of the per-call hot path).

    compute_dtype: dtype fed to the MXU.  bf16 halves weight DMA/VMEM bytes and runs at
    full MXU rate on v5e/v6e/v7x; biases and the epilogue stay in f32 regardless.
    """
    w1, b1, w2, b2, w3, b3 = params
    input_dim = w1.shape[0]
    V = w3.shape[1]

    # Lane-dense padding of input/hidden dims: zero rows/cols + zero biases keep the
    # math exact.
    w1p = _pad_axis(_pad_axis(w1, 0, LANE), 1, LANE).astype(compute_dtype)
    b1p = _pad_axis(b1, 1, LANE).astype(jnp.float32)
    w2p = _pad_axis(_pad_axis(w2, 0, LANE), 1, LANE).astype(compute_dtype)
    b2p = _pad_axis(b2, 1, LANE).astype(jnp.float32)

    # Vocab axis padded too (lane-dense logits/output).  Padded columns must act as
    # -inf in the softmax, so their bias is -1e30 (their weight columns are zero).
    vmult = LANE if V <= _FUSED_VOCAB_MAX else _DEFAULT_VOCAB_TILE
    w3p = _pad_axis(_pad_axis(w3, 0, LANE), 1, vmult).astype(compute_dtype)
    b3p = _pad_axis(b3, 1, vmult, value=_NEG_INF).astype(jnp.float32)

    return PreparedParams(weights=(w1p, b1p, w2p, b2p, w3p, b3p),
                          vocab_size=V, input_dim=input_dim)


def _nnlm_fused_kernel(x_ref, w1_ref, b1_ref, w2_ref, b2_ref, w3_ref, b3_ref, o_ref):
    """3-layer MLP + log-softmax for one batch tile; full (tm, Vp) logits tile in VMEM.

    Matmuls run on the MXU in the weights' dtype (f32 or bf16) with f32 accumulation;
    bias-add / ReLU / log-softmax stay in f32 (VPU/EUP).  Dropout is identity.
    """
    wt = w1_ref.dtype
    h1 = jnp.dot(x_ref[...], w1_ref[...], preferred_element_type=jnp.float32) + b1_ref[...]
    h1 = jnp.maximum(h1, 0.0)
    h2 = jnp.dot(h1.astype(wt), w2_ref[...], preferred_element_type=jnp.float32) + b2_ref[...]
    h2 = jnp.maximum(h2, 0.0)
    logits = jnp.dot(h2.astype(wt), w3_ref[...], preferred_element_type=jnp.float32) + b3_ref[...]

    m = jnp.max(logits, axis=-1, keepdims=True)
    shifted = logits - m
    lse = jnp.log(jnp.sum(jnp.exp(shifted), axis=-1, keepdims=True))
    o_ref[...] = (shifted - lse).astype(o_ref.dtype)


def _nnlm_vtiled_kernel(x_ref, w1_ref, b1_ref, w2_ref, b2_ref, w3_ref, b3_ref,
                        o_ref, h2_sc, m_sc, l_sc):
    """Two-pass online log-softmax over vocab tiles.

    grid = (batch_tiles, 2, vocab_tiles).  Pass 0 accumulates running max / sum-exp,
    pass 1 recomputes the logits tile and writes log-probs.  h2 is computed once per
    batch tile and cached in VMEM scratch (only the w3 matmul is done twice).
    """
    p = pl.program_id(1)   # 0 = stats pass, 1 = write pass
    v = pl.program_id(2)   # vocab tile
    wt = w1_ref.dtype

    @pl.when(jnp.logical_and(p == 0, v == 0))
    def _():
        h1 = jnp.dot(x_ref[...], w1_ref[...], preferred_element_type=jnp.float32) + b1_ref[...]
        h1 = jnp.maximum(h1, 0.0)
        h2 = jnp.dot(h1.astype(wt), w2_ref[...], preferred_element_type=jnp.float32) + b2_ref[...]
        h2_sc[...] = jnp.maximum(h2, 0.0).astype(h2_sc.dtype)
        m_sc[...] = jnp.full_like(m_sc, -jnp.inf)
        l_sc[...] = jnp.zeros_like(l_sc)

    logits = (jnp.dot(h2_sc[...], w3_ref[...], preferred_element_type=jnp.float32)
              + b3_ref[...])

    @pl.when(p == 0)
    def _():
        m_new = jnp.maximum(m_sc[...], jnp.max(logits, axis=-1, keepdims=True))
        l_sc[...] = (l_sc[...] * jnp.exp(m_sc[...] - m_new)
                     + jnp.sum(jnp.exp(logits - m_new), axis=-1, keepdims=True))
        m_sc[...] = m_new

    @pl.when(p == 1)
    def _():
        lse = m_sc[...] + jnp.log(l_sc[...])
        o_ref[...] = (logits - lse).astype(o_ref.dtype)


def nnlm_forward(inputs, prep, *, out_dtype=jnp.float32,
                 block_batch=None, block_vocab=None):
    """inputs: (B, context_size, embedding_dim).  Returns (B, vocab) log-probs.

    prep:        result of prepare_params() (weights padded & cast once, outside hot path).
    out_dtype:   dtype of the stored log-probs (bf16 halves output HBM traffic).
    block_batch: batch tile size (rounded to the dtype's sublane packing).
    block_vocab: vocab tile size; forces the two-pass online-softmax kernel.
    """
    w1, b1, w2, b2, w3, b3 = prep.weights
    V = prep.vocab_size
    compute_dtype = w1.dtype
    B = inputs.shape[0]
    Vp = w3.shape[1]

    x = inputs.reshape(B, -1)
    if x.shape[1] != prep.input_dim:
        raise ValueError(f"flattened input dim {x.shape[1]} != expected {prep.input_dim}")
    x = _pad_axis(x.astype(jnp.float32), 1, LANE).astype(compute_dtype)
    Dp = x.shape[1]
    assert Dp == w1.shape[0]
    H2p = w2.shape[1]

    # Batch tile: multiple of the sublane packing (16 rows for any 16-bit operand), and
    # by default sized so there are >= 2 batch tiles ("parallel" can then use both v7x
    # TensorCores).  v5e/v6e (1 TC) are unaffected.
    pack = 16 if (jnp.dtype(compute_dtype).itemsize == 2
                  or jnp.dtype(out_dtype).itemsize == 2) else 8
    if block_batch is None:
        tm = min(256, _round_up(-(-B // 2), pack))
    else:
        tm = _round_up(block_batch, pack)
    x = _pad_axis(x, 0, tm)
    Bp = x.shape[0]
    nb = Bp // tm

    # Vocab tile.
    if block_vocab is None:
        tv = Vp if Vp <= _FUSED_VOCAB_MAX else _DEFAULT_VOCAB_TILE
    else:
        tv = min(_round_up(block_vocab, LANE), Vp)
    if Vp % tv != 0:
        # Rare fallback (user-forced tile not dividing the padded vocab): re-pad here.
        w3 = _pad_axis(w3, 1, tv)
        b3 = _pad_axis(b3, 1, tv, value=_NEG_INF)
        Vp = w3.shape[1]
    nv = Vp // tv

    def resident(a):
        # Constant index_map -> same block every grid step; stays VMEM-resident and is
        # not re-DMA'd per step.
        # TODO(synk): pl.Buffered(1) would drop the unused second buffer for these.
        return pl.BlockSpec(a.shape, lambda *_: (0,) * a.ndim)

    if nv == 1:
        out = pl.pallas_call(
            _nnlm_fused_kernel,
            out_shape=jax.ShapeDtypeStruct((Bp, Vp), out_dtype),
            grid=(nb,),
            in_specs=[
                pl.BlockSpec((tm, Dp), lambda i: (i, 0)),   # activations tiled over batch
                resident(w1), resident(b1),
                resident(w2), resident(b2),
                resident(w3), resident(b3),
            ],
            out_specs=pl.BlockSpec((tm, Vp), lambda i: (i, 0)),
            compiler_params=pltpu.CompilerParams(
                dimension_semantics=("parallel",)),
        )(x, w1, b1, w2, b2, w3, b3)
    else:
        out = pl.pallas_call(
            _nnlm_vtiled_kernel,
            out_shape=jax.ShapeDtypeStruct((Bp, Vp), out_dtype),
            grid=(nb, 2, nv),
            in_specs=[
                pl.BlockSpec((tm, Dp), lambda b, p, v: (b, 0)),
                resident(w1), resident(b1),
                resident(w2), resident(b2),
                pl.BlockSpec((H2p, tv), lambda b, p, v: (0, v)),
                pl.BlockSpec((1, tv), lambda b, p, v: (0, v)),
            ],
            # Pass 0 parks the output on block (b, 0) (index unchanged -> no writeback);
            # pass 1 writes each (b, v) tile exactly once -> 1x output HBM traffic.
            out_specs=pl.BlockSpec((tm, tv), lambda b, p, v: (b, p * v)),
            scratch_shapes=[
                pltpu.VMEM((tm, H2p), compute_dtype),   # cached h2
                pltpu.VMEM((tm, 1), jnp.float32),       # running max
                pltpu.VMEM((tm, 1), jnp.float32),       # running sum-exp
            ],
            compiler_params=pltpu.CompilerParams(
                dimension_semantics=("parallel", "arbitrary", "arbitrary")),
        )(x, w1, b1, w2, b2, w3, b3)

    return out[:B, :V]


def init_params(key, input_dim, hidden_dims, vocab_size):
    """Deterministic parameter init; weights stored as (in_features, out_features)."""
    dims = [input_dim] + list(hidden_dims) + [vocab_size]
    params = []
    for i in range(len(dims) - 1):
        key, kw, kb = jax.random.split(key, 3)
        bound = 1.0 / jnp.sqrt(dims[i])
        w = jax.random.uniform(kw, (dims[i], dims[i + 1]), jnp.float32, -bound, bound)
        b = jax.random.uniform(kb, (1, dims[i + 1]), jnp.float32, -bound, bound)
        params += [w, b]
    return tuple(params)


def nnlm_reference(inputs, params):
    """Plain-JAX reference (eval semantics, f32)."""
    w1, b1, w2, b2, w3, b3 = params
    x = inputs.reshape(inputs.shape[0], -1)
    h1 = jnp.maximum(x @ w1 + b1, 0.0)
    h2 = jnp.maximum(h1 @ w2 + b2, 0.0)
    logits = h2 @ w3 + b3
    return jax.nn.log_softmax(logits, axis=1)


if __name__ == "__main__":
    vocab_size = 256
    embedding_dim = 32
    context_size = 5
    hidden_dims = [128, 64]
    input_dim = context_size * embedding_dim  # 160

    key = jax.random.PRNGKey(0)
    key, kx = jax.random.split(key)
    params = init_params(key, input_dim, hidden_dims, vocab_size)

    batch = 8
    inputs = jax.random.normal(kx, (batch, context_size, embedding_dim), jnp.float32)
    ref = nnlm_reference(inputs, params)

    # One-time parameter preparation (padding + casts hoisted out of the hot path).
    prep_f32 = prepare_params(params)

    # 1) f32 fused path: exact match vs reference.
    out = jax.block_until_ready(nnlm_forward(inputs, prep_f32))
    assert out.shape == (batch, vocab_size)
    assert jnp.allclose(out, ref, atol=1e-4, rtol=1e-4), "f32 mismatch vs reference"
    assert jnp.allclose(jnp.sum(jnp.exp(out), axis=1), 1.0, atol=1e-4)

    # 2) Multi-batch-tile grid (non-divisible batch).
    key, kx2 = jax.random.split(key)
    inputs_big = jax.random.normal(kx2, (40, context_size, embedding_dim), jnp.float32)
    ref_big = nnlm_reference(inputs_big, params)
    out_big = jax.block_until_ready(nnlm_forward(inputs_big, prep_f32, block_batch=16))
    assert out_big.shape == (40, vocab_size)
    assert jnp.allclose(out_big, ref_big, atol=1e-4, rtol=1e-4), "tiled-grid mismatch"

    # 3) Vocab-tiled two-pass online log-softmax path.
    out_vt = jax.block_until_ready(
        nnlm_forward(inputs_big, prep_f32, block_batch=16, block_vocab=128))
    assert out_vt.shape == (40, vocab_size)
    assert jnp.allclose(out_vt, ref_big, atol=1e-4, rtol=1e-4), "vocab-tiled mismatch"

    # 4) bf16 MXU path (valid on v5e/v6e/v7x): f32 accumulation + f32 epilogue.
    prep_bf16 = prepare_params(params, compute_dtype=jnp.bfloat16)
    out_bf16 = jax.block_until_ready(nnlm_forward(inputs, prep_bf16))
    assert out_bf16.shape == (batch, vocab_size)
    assert jnp.allclose(jnp.sum(jnp.exp(out_bf16), axis=1), 1.0, atol=1e-3)
    assert float(jnp.max(jnp.abs(out_bf16 - ref))) < 0.2, "bf16 drifted too far"

    # 5) bf16 compute + bf16 output + vocab tiling (all options together).
    out_bf16_vt = jax.block_until_ready(
        nnlm_forward(inputs_big, prep_bf16, block_vocab=128, out_dtype=jnp.bfloat16))
    assert out_bf16_vt.shape == (40, vocab_size)
    assert jnp.allclose(jnp.sum(jnp.exp(out_bf16_vt.astype(jnp.float32)), axis=1),
                        1.0, atol=5e-2)
    assert float(jnp.max(jnp.abs(out_bf16_vt.astype(jnp.float32) - ref_big))) < 0.3

    print("KERNEL_OK")
</pallas_src>

<mosaic_0001>
module attributes {stable_mosaic.version = 11 : i64} {
  func.func @_nnlm_fused_kernel(%arg0: i32, %arg1: memref<8x256xf32, #tpu.memory_space<vmem>>, %arg2: memref<256x128xf32, #tpu.memory_space<vmem>>, %arg3: memref<1x128xf32, #tpu.memory_space<vmem>>, %arg4: memref<128x128xf32, #tpu.memory_space<vmem>>, %arg5: memref<1x128xf32, #tpu.memory_space<vmem>>, %arg6: memref<128x256xf32, #tpu.memory_space<vmem>>, %arg7: memref<1x256xf32, #tpu.memory_space<vmem>>, %arg8: memref<8x256xf32, #tpu.memory_space<vmem>>) attributes {dimension_semantics = [#tpu.dimension_semantics<parallel>], iteration_bounds = array<i64: 1>, scalar_prefetch = 0 : i64, scratch_operands = 0 : i64, tpu.core_type = #tpu.core_type<tc>, window_params = [{transform_indices = @transform_0, window_bounds = array<i64: 8, 256>}, {pipeline_mode = #tpu.pipeline_mode<synchronous>, transform_indices = @transform_1, window_bounds = array<i64: 256, 128>}, {pipeline_mode = #tpu.pipeline_mode<synchronous>, transform_indices = @transform_2, window_bounds = array<i64: 1, 128>}, {pipeline_mode = #tpu.pipeline_mode<synchronous>, transform_indices = @transform_3, window_bounds = array<i64: 128, 128>}, {pipeline_mode = #tpu.pipeline_mode<synchronous>, transform_indices = @transform_4, window_bounds = array<i64: 1, 128>}, {pipeline_mode = #tpu.pipeline_mode<synchronous>, transform_indices = @transform_5, window_bounds = array<i64: 128, 256>}, {pipeline_mode = #tpu.pipeline_mode<synchronous>, transform_indices = @transform_6, window_bounds = array<i64: 1, 256>}, {transform_indices = @transform_7, window_bounds = array<i64: 8, 256>}]} {
    %c0 = arith.constant 0 : index
    %c0_0 = arith.constant 0 : index
    %0 = vector.load %arg1[%c0, %c0_0] : memref<8x256xf32, #tpu.memory_space<vmem>>, vector<8x256xf32>
    %c0_1 = arith.constant 0 : index
    %c0_2 = arith.constant 0 : index
    %1 = vector.load %arg2[%c0_1, %c0_2] : memref<256x128xf32, #tpu.memory_space<vmem>>, vector<256x128xf32>
    %cst = arith.constant dense<0.000000e+00> : vector<8x128xf32>
    %2 = tpu.matmul %0, %1, %cst {dimension_numbers = #tpu.dot_dimension_numbers<[1], [0], [0], [1], [0, 0, 1, 1], [], []>} : vector<8x256xf32>, vector<256x128xf32>, vector<8x128xf32> -> vector<8x128xf32>
    %c0_3 = arith.constant 0 : index
    %c0_4 = arith.constant 0 : index
    %3 = vector.load %arg3[%c0_3, %c0_4] : memref<1x128xf32, #tpu.memory_space<vmem>>, vector<1x128xf32>
    %4 = vector.broadcast %3 : vector<1x128xf32> to vector<8x128xf32>
    %5 = arith.addf %2, %4 : vector<8x128xf32>
    %cst_5 = arith.constant 0.000000e+00 : f32
    %6 = vector.broadcast %cst_5 : f32 to vector<8x128xf32>
    %7 = arith.maximumf %5, %6 : vector<8x128xf32>
    %c0_6 = arith.constant 0 : index
    %c0_7 = arith.constant 0 : index
    %8 = vector.load %arg4[%c0_6, %c0_7] : memref<128x128xf32, #tpu.memory_space<vmem>>, vector<128x128xf32>
    %cst_8 = arith.constant dense<0.000000e+00> : vector<8x128xf32>
    %9 = tpu.matmul %7, %8, %cst_8 {dimension_numbers = #tpu.dot_dimension_numbers<[1], [0], [0], [1], [0, 0, 1, 1], [], []>} : vector<8x128xf32>, vector<128x128xf32>, vector<8x128xf32> -> vector<8x128xf32>
    %c0_9 = arith.constant 0 : index
    %c0_10 = arith.constant 0 : index
    %10 = vector.load %arg5[%c0_9, %c0_10] : memref<1x128xf32, #tpu.memory_space<vmem>>, vector<1x128xf32>
    %11 = vector.broadcast %10 : vector<1x128xf32> to vector<8x128xf32>
    %12 = arith.addf %9, %11 : vector<8x128xf32>
    %cst_11 = arith.constant 0.000000e+00 : f32
    %13 = vector.broadcast %cst_11 : f32 to vector<8x128xf32>
    %14 = arith.maximumf %12, %13 : vector<8x128xf32>
    %c0_12 = arith.constant 0 : index
    %c0_13 = arith.constant 0 : index
    %15 = vector.load %arg6[%c0_12, %c0_13] : memref<128x256xf32, #tpu.memory_space<vmem>>, vector<128x256xf32>
    %cst_14 = arith.constant dense<0.000000e+00> : vector<8x256xf32>
    %16 = tpu.matmul %14, %15, %cst_14 {dimension_numbers = #tpu.dot_dimension_numbers<[1], [0], [0], [1], [0, 0, 1, 1], [], []>} : vector<8x128xf32>, vector<128x256xf32>, vector<8x256xf32> -> vector<8x256xf32>
    %c0_15 = arith.constant 0 : index
    %c0_16 = arith.constant 0 : index
    %17 = vector.load %arg7[%c0_15, %c0_16] : memref<1x256xf32, #tpu.memory_space<vmem>>, vector<1x256xf32>
    %18 = vector.broadcast %17 : vector<1x256xf32> to vector<8x256xf32>
    %19 = arith.addf %16, %18 : vector<8x256xf32>
    %cst_17 = arith.constant dense<0xFF800000> : vector<8xf32>
    %20 = vector.multi_reduction <maximumf>, %19, %cst_17 [1] : vector<8x256xf32> to vector<8xf32>
    %21 = vector.shape_cast %20 : vector<8xf32> to vector<8x1xf32>
    %22 = vector.broadcast %21 : vector<8x1xf32> to vector<8x256xf32>
    %23 = arith.subf %19, %22 : vector<8x256xf32>
    %24 = math.exp %23 : vector<8x256xf32>
    %cst_18 = arith.constant dense<0.000000e+00> : vector<8xf32>
    %25 = vector.multi_reduction <add>, %24, %cst_18 [1] : vector<8x256xf32> to vector<8xf32>
    %26 = vector.shape_cast %25 : vector<8xf32> to vector<8x1xf32>
    %27 = math.log %26 : vector<8x1xf32>
    %28 = vector.broadcast %27 : vector<8x1xf32> to vector<8x256xf32>
    %29 = arith.subf %23, %28 : vector<8x256xf32>
    %c0_19 = arith.constant 0 : index
    %c0_20 = arith.constant 0 : index
    %30 = vector.load %arg8[%c0_19, %c0_20] : memref<8x256xf32, #tpu.memory_space<vmem>>, vector<8x256xf32>
    tpu.vector_store %arg8[%c0_19, %c0_20], %29 {strides = array<i32>} : memref<8x256xf32, #tpu.memory_space<vmem>>, vector<8x256xf32>,
    return
  }
  func.func @transform_0(%arg0: i32) -> (i32, i32) {
    %c0_i32 = arith.constant 0 : i32
    %c0_i32_0 = arith.constant 0 : i32
    return %arg0, %c0_i32 : i32, i32
  }
  func.func @transform_1(%arg0: i32) -> (i32, i32) {
    %c0_i32 = arith.constant 0 : i32
    %c0_i32_0 = arith.constant 0 : i32
    %c0_i32_1 = arith.constant 0 : i32
    return %c0_i32, %c0_i32_0 : i32, i32
  }
  func.func @transform_2(%arg0: i32) -> (i32, i32) {
    %c0_i32 = arith.constant 0 : i32
    %c0_i32_0 = arith.constant 0 : i32
    %c0_i32_1 = arith.constant 0 : i32
    return %c0_i32, %c0_i32_0 : i32, i32
  }
  func.func @transform_3(%arg0: i32) -> (i32, i32) {
    %c0_i32 = arith.constant 0 : i32
    %c0_i32_0 = arith.constant 0 : i32
    %c0_i32_1 = arith.constant 0 : i32
    return %c0_i32, %c0_i32_0 : i32, i32
  }
  func.func @transform_4(%arg0: i32) -> (i32, i32) {
    %c0_i32 = arith.constant 0 : i32
    %c0_i32_0 = arith.constant 0 : i32
    %c0_i32_1 = arith.constant 0 : i32
    return %c0_i32, %c0_i32_0 : i32, i32
  }
  func.func @transform_5(%arg0: i32) -> (i32, i32) {
    %c0_i32 = arith.constant 0 : i32
    %c0_i32_0 = arith.constant 0 : i32
    %c0_i32_1 = arith.constant 0 : i32
    return %c0_i32, %c0_i32_0 : i32, i32
  }
  func.func @transform_6(%arg0: i32) -> (i32, i32) {
    %c0_i32 = arith.constant 0 : i32
    %c0_i32_0 = arith.constant 0 : i32
    %c0_i32_1 = arith.constant 0 : i32
    return %c0_i32, %c0_i32_0 : i32, i32
  }
  func.func @transform_7(%arg0: i32) -> (i32, i32) {
    %c0_i32 = arith.constant 0 : i32
    %c0_i32_0 = arith.constant 0 : i32
    return %arg0, %c0_i32 : i32, i32
  }
}

</mosaic_0001>

<llo_original>
// kernel: tpu_custom_call.1
$region0: #{tpu_custom_call.1}
  #allocation0 [shape = 'u32[]', space=smem, size = 0x4, offset = 0x4, fixed_abs, tag = 'smem constant byte address 0x4 - core index']
  #allocation1 [shape = 'u32[72,128]{1,0:T(1,128)}', space=vmem, size = 0x9000, scoped, tag = 'internal scratch']
  %s0 = inlined_call_operand.hbm [shape: f32[8,256], index: 0, kind: input, shape index: {}]
  %s1 = inlined_call_operand.hbm [shape: f32[256,128], index: 1, kind: input, shape index: {}]
  %s2 = inlined_call_operand.vmem [shape: f32[1,128], index: 2, kind: input, shape index: {}]
  %s3 = inlined_call_operand.hbm [shape: f32[128,128], index: 3, kind: input, shape index: {}]
  %s4 = inlined_call_operand.hbm [shape: f32[1,128], index: 4, kind: input, shape index: {}]
  %s5 = inlined_call_operand.hbm [shape: f32[128,256], index: 5, kind: input, shape index: {}]
  %s6 = inlined_call_operand.vmem [shape: f32[1,256], index: 6, kind: input, shape index: {}]
  %s7 = inlined_call_operand.hbm [shape: f32[8,256], index: 7, kind: output, shape index: {}]
  %s8 = sld [smem:[#allocation0]]
  $region58: #{tpu_custom_call.1} parent=0
    _
  %s10 = ssub.s32 1, %s8
  %s11 = scalar_select 0, %s10, %s8
  $region1: #{tpu_custom_call.1} parent=0
    #allocation2 [shape = 'u8[8192]{0}', space=vmem, size = 0x2000, scoped, tag = 'input window, operand 0, single buffered']
    #allocation3 [shape = 's32[1]{0}', space=sflag, size = 0x4, scoped, tag = 'scoped memory for tpu_custom_call.1']
    #allocation4 [shape = 's32[1]{0}', space=sflag, size = 0x4, scoped, tag = 'scoped memory for tpu_custom_call.1']
    #allocation5 [shape = 'u8[131072]{0}', space=vmem, size = 0x20000, scoped, tag = 'input window, operand 1, single buffered']
    #allocation6 [shape = 's32[1]{0}', space=sflag, size = 0x4, scoped, tag = 'scoped memory for tpu_custom_call.1']
    #allocation7 [shape = 'u8[65536]{0}', space=vmem, size = 0x10000, scoped, tag = 'input window, operand 3, single buffered']
    #allocation8 [shape = 'u8[512]{0}', space=vmem, size = 0x400, scoped, tag = 'input window, operand 4, single buffered']
    #allocation9 [shape = 's32[1]{0}', space=sflag, size = 0x4, scoped, tag = 'scoped memory for tpu_custom_call.1']
    #allocation10 [shape = 'u8[131072]{0}', space=vmem, size = 0x20000, scoped, tag = 'input window, operand 5, single buffered']
    #allocation11 [shape = 'u8[8192]{0}', space=vmem, size = 0x2000, scoped, tag = 'output window, operand 0, single buffered']
    %12 = vsyncpa [#allocation3], 0
    %13 = vsyncpa [#allocation6], 0
    %14 = vsyncpa [#allocation9], 0
    %15 = vsyncpa [#allocation4], 0
    // Predicated region
    $region2: #{tpu_custom_call.1} parent=1 // pred_check
      _
    $region3: #{tpu_custom_call.1} parent=1 // pred_check_branch
      %17 = sbr.rel (0) target = $region5
    $region4: #{tpu_custom_call.1} parent=1 // pred_region
      %19 = vsyncadd [#allocation3], 0
      %s21 = sshll.u32 %s0, 4
      %s22 = int_to_ptr.hbm [resolvable:$true] %s21
      %s23 = sshll.u32 [#allocation2], 4
      %s24 = int_to_ptr.vmem [resolvable:$true] %s23
      %26 = dma.hbm_to_vmem [thread:$0]  %s22, 256, %s24, [#allocation3]
    $region5: #{tpu_custom_call.1} parent=1 // pred_fallthru
      _
    // Predicated region
    $region6: #{tpu_custom_call.1} parent=1 // pred_check
      _
    $region7: #{tpu_custom_call.1} parent=1 // pred_check_branch
      %28 = sbr.rel (0) target = $region9
    $region8: #{tpu_custom_call.1} parent=1 // pred_region
      %30 = vsyncadd [#allocation6], 0
      %s31 = sshll.u32 %s1, 4
      %s32 = int_to_ptr.hbm [resolvable:$true] %s31
      %s33 = sshll.u32 [#allocation5], 4
      %s34 = int_to_ptr.vmem [resolvable:$true] %s33
      %39 = dma.hbm_to_vmem [thread:$0]  %s32, 4096, %s34, [#allocation6], 128, 128, 8
    $region9: #{tpu_custom_call.1} parent=1 // pred_fallthru
      _
    // Predicated region
    $region10: #{tpu_custom_call.1} parent=1 // pred_check
      _
    $region11: #{tpu_custom_call.1} parent=1 // pred_check_branch
      %41 = sbr.rel (0) target = $region13
    $region12: #{tpu_custom_call.1} parent=1 // pred_region
      _
    $region13: #{tpu_custom_call.1} parent=1 // pred_fallthru
      _
    // Predicated region
    $region14: #{tpu_custom_call.1} parent=1 // pred_check
      _
    $region15: #{tpu_custom_call.1} parent=1 // pred_check_branch
      %43 = sbr.rel (0) target = $region17
    $region16: #{tpu_custom_call.1} parent=1 // pred_region
      %45 = vsyncadd [#allocation6], 0
      %s46 = sshll.u32 %s3, 4
      %s47 = int_to_ptr.hbm [resolvable:$true] %s46
      %s48 = sshll.u32 [#allocation7], 4
      %s49 = int_to_ptr.vmem [resolvable:$true] %s48
      %54 = dma.hbm_to_vmem [thread:$0]  %s47, 2048, %s49, [#allocation6], 128, 128, 8
    $region17: #{tpu_custom_call.1} parent=1 // pred_fallthru
      _
    // Predicated region
    $region18: #{tpu_custom_call.1} parent=1 // pred_check
      _
    $region19: #{tpu_custom_call.1} parent=1 // pred_check_branch
      %56 = sbr.rel (0) target = $region21
    $region20: #{tpu_custom_call.1} parent=1 // pred_region
      %58 = vsyncadd [#allocation9], 0
      %s60 = sshll.u32 %s4, 4
      %s61 = int_to_ptr.hbm [resolvable:$true] %s60
      %s62 = sshll.u32 [#allocation8], 4
      %s63 = int_to_ptr.vmem [resolvable:$true] %s62
      %65 = dma.hbm_to_vmem [thread:$0]  %s61, 16, %s63, [#allocation9]
    $region21: #{tpu_custom_call.1} parent=1 // pred_fallthru
      _
    // Predicated region
    $region22: #{tpu_custom_call.1} parent=1 // pred_check
      _
    $region23: #{tpu_custom_call.1} parent=1 // pred_check_branch
      %67 = sbr.rel (0) target = $region25
    $region24: #{tpu_custom_call.1} parent=1 // pred_region
      %69 = vsyncadd [#allocation9], 0
      %s70 = sshll.u32 %s5, 4
      %s71 = int_to_ptr.hbm [resolvable:$true] %s70
      %s72 = sshll.u32 [#allocation10], 4
      %s73 = int_to_ptr.vmem [resolvable:$true] %s72
      %78 = dma.hbm_to_vmem [thread:$0]  %s71, 4096, %s73, [#allocation9], 256, 256, 16
    $region25: #{tpu_custom_call.1} parent=1 // pred_fallthru
      _
    // Predicated region
    $region26: #{tpu_custom_call.1} parent=1 // pred_check
      _
    $region27: #{tpu_custom_call.1} parent=1 // pred_check_branch
      %80 = sbr.rel (0) target = $region29
    $region28: #{tpu_custom_call.1} parent=1 // pred_region
      _
    $region29: #{tpu_custom_call.1} parent=1 // pred_fallthru
      _
    // Predicated region
    $region30: #{tpu_custom_call.1} parent=1 // pred_check
      _
    $region31: #{tpu_custom_call.1} parent=1 // pred_check_branch
      %82 = sbr.rel (0) target = $region33
    $region32: #{tpu_custom_call.1} parent=1 // pred_region
      %84 = dma.done [#allocation3], 256
    $region33: #{tpu_custom_call.1} parent=1 // pred_fallthru
      _
    // Predicated region
    $region34: #{tpu_custom_call.1} parent=1 // pred_check
      _
    $region35: #{tpu_custom_call.1} parent=1 // pred_check_branch
      %86 = sbr.rel (0) target = $region37
    $region36: #{tpu_custom_call.1} parent=1 // pred_region
      %88 = dma.done [#allocation6], 4096
    $region37: #{tpu_custom_call.1} parent=1 // pred_fallthru
      _
    // Predicated region
    $region38: #{tpu_custom_call.1} parent=1 // pred_check
      _
    $region39: #{tpu_custom_call.1} parent=1 // pred_check_branch
      %90 = sbr.rel (0) target = $region41
    $region40: #{tpu_custom_call.1} parent=1 // pred_region
      %92 = dma.done [#allocation6], 2048
    $region41: #{tpu_custom_call.1} parent=1 // pred_fallthru
      _
    // Predicated region
    $region42: #{tpu_custom_call.1} parent=1 // pred_check
      _
    $region43: #{tpu_custom_call.1} parent=1 // pred_check_branch
      %94 = sbr.rel (0) target = $region45
    $region44: #{tpu_custom_call.1} parent=1 // pred_region
      %96 = dma.done [#allocation9], 16
    $region45: #{tpu_custom_call.1} parent=1 // pred_fallthru
      _
    // Predicated region
    $region46: #{tpu_custom_call.1} parent=1 // pred_check
      _
    $region47: #{tpu_custom_call.1} parent=1 // pred_check_branch
      %98 = sbr.rel (0) target = $region49
    $region48: #{tpu_custom_call.1} parent=1 // pred_region
      %100 = dma.done [#allocation9], 4096
    $region49: #{tpu_custom_call.1} parent=1 // pred_fallthru
      _
    %v101 = vld [vmem:[#allocation2] sm:$0xff]
    %v102 = vld [vmem:[#allocation2 + $0x8] sm:$0xff]
    %v103 = vld [vmem:[#allocation5] sm:$0xff]
    %v104 = vld [vmem:[#allocation5 + $0x8] sm:$0xff]
    %v105 = vld [vmem:[#allocation5 + $0x10] sm:$0xff]
    %v106 = vld [vmem:[#allocation5 + $0x18] sm:$0xff]
    %v107 = vld [vmem:[#allocation5 + $0x20] sm:$0xff]
    %v108 = vld [vmem:[#allocation5 + $0x28] sm:$0xff]
    %v109 = vld [vmem:[#allocation5 + $0x30] sm:$0xff]
    %v110 = vld [vmem:[#allocation5 + $0x38] sm:$0xff]
    %v111 = vld [vmem:[#allocation5 + $0x40] sm:$0xff]
    %v112 = vld [vmem:[#allocation5 + $0x48] sm:$0xff]
    %v113 = vld [vmem:[#allocation5 + $0x50] sm:$0xff]
    %v114 = vld [vmem:[#allocation5 + $0x58] sm:$0xff]
    %v115 = vld [vmem:[#allocation5 + $0x60] sm:$0xff]
    %v116 = vld [vmem:[#allocation5 + $0x68] sm:$0xff]
    %v117 = vld [vmem:[#allocation5 + $0x70] sm:$0xff]
    %v118 = vld [vmem:[#allocation5 + $0x78] sm:$0xff]
    %v119 = vld [vmem:[#allocation5 + $0x80] sm:$0xff]
    %v120 = vld [vmem:[#allocation5 + $0x88] sm:$0xff]
    %v121 = vld [vmem:[#allocation5 + $0x90] sm:$0xff]
    %v122 = vld [vmem:[#allocation5 + $0x98] sm:$0xff]
    %v123 = vld [vmem:[#allocation5 + $0xa0] sm:$0xff]
    %v124 = vld [vmem:[#allocation5 + $0xa8] sm:$0xff]
    %v125 = vld [vmem:[#allocation5 + $0xb0] sm:$0xff]
    %v126 = vld [vmem:[#allocation5 + $0xb8] sm:$0xff]
    %v127 = vld [vmem:[#allocation5 + $0xc0] sm:$0xff]
    %v128 = vld [vmem:[#allocation5 + $0xc8] sm:$0xff]
    %v129 = vld [vmem:[#allocation5 + $0xd0] sm:$0xff]
    %v130 = vld [vmem:[#allocation5 + $0xd8] sm:$0xff]
    %v131 = vld [vmem:[#allocation5 + $0xe0] sm:$0xff]
    %v132 = vld [vmem:[#allocation5 + $0xe8] sm:$0xff]
    %v133 = vld [vmem:[#allocation5 + $0xf0] sm:$0xff]
    %v134 = vld [vmem:[#allocation5 + $0xf8] sm:$0xff]
    %v135 = vld [vmem:[%s2] sm:$0x1]
    %v137 = vperm.slane %v135, 0
    %139 = vmatpush.msra.mxu0 %v118
    %140 = vmatpush.msra.mxu0 %v117
    %141 = vmatpush.msra.mxu0 %v116
    %142 = vmatpush.msra.mxu0 %v115
    %143 = vmatpush.msra.mxu0 %v114
    %144 = vmatpush.msra.mxu0 %v113
    %145 = vmatpush.msra.mxu0 %v112
    %146 = vmatpush.msra.mxu0 %v111
    %147 = vmatpush.msra.mxu0 %v110
    %148 = vmatpush.msra.mxu0 %v109
    %149 = vmatpush.msra.mxu0 %v108
    %150 = vmatpush.msra.mxu0 %v107
    %151 = vmatpush.msra.mxu0 %v106
    %152 = vmatpush.msra.mxu0 %v105
    %153 = vmatpush.msra.mxu0 %v104
    %154 = vmatpush.msra.mxu0 %v103
    %155 = vmatmul.f32.gmra.mxu0 %v101
    %v156 = vpop.f32.mrf.mxu0
    %v157 = vadd.f32 %v137, %v156
    %158 = vdwg.mxu0
    %159 = vmatpush.msra.mxu0 %v134
    %160 = vmatpush.msra.mxu0 %v133
    %161 = vmatpush.msra.mxu0 %v132
    %162 = vmatpush.msra.mxu0 %v131
    %163 = vmatpush.msra.mxu0 %v130
    %164 = vmatpush.msra.mxu0 %v129
    %165 = vmatpush.msra.mxu0 %v128
    %166 = vmatpush.msra.mxu0 %v127
    %167 = vmatpush.msra.mxu0 %v126
    %168 = vmatpush.msra.mxu0 %v125
    %169 = vmatpush.msra.mxu0 %v124
    %170 = vmatpush.msra.mxu0 %v123
    %171 = vmatpush.msra.mxu0 %v122
    %172 = vmatpush.msra.mxu0 %v121
    %173 = vmatpush.msra.mxu0 %v120
    %174 = vmatpush.msra.mxu0 %v119
    %175 = vmatmul.f32.gmra.mxu0 %v102
    %v176 = vpop.f32.mrf.mxu0
    %v177 = vadd.f32 %v157, %v176
    %178 = vdwg.mxu0
    %v179 = vmax.f32 %v177, 0.0
    %v180 = vld [vmem:[#allocation7] sm:$0xff]
    %v181 = vld [vmem:[#allocation7 + $0x8] sm:$0xff]
    %v182 = vld [vmem:[#allocation7 + $0x10] sm:$0xff]
    %v183 = vld [vmem:[#allocation7 + $0x18] sm:$0xff]
    %v184 = vld [vmem:[#allocation7 + $0x20] sm:$0xff]
    %v185 = vld [vmem:[#allocation7 + $0x28] sm:$0xff]
    %v186 = vld [vmem:[#allocation7 + $0x30] sm:$0xff]
    %v187 = vld [vmem:[#allocation7 + $0x38] sm:$0xff]
    %v188 = vld [vmem:[#allocation7 + $0x40] sm:$0xff]
    %v189 = vld [vmem:[#allocation7 + $0x48] sm:$0xff]
    %v190 = vld [vmem:[#allocation7 + $0x50] sm:$0xff]
    %v191 = vld [vmem:[#allocation7 + $0x58] sm:$0xff]
    %v192 = vld [vmem:[#allocation7 + $0x60] sm:$0xff]
    %v193 = vld [vmem:[#allocation7 + $0x68] sm:$0xff]
    %v194 = vld [vmem:[#allocation7 + $0x70] sm:$0xff]
    %v195 = vld [vmem:[#allocation7 + $0x78] sm:$0xff]
    %v196 = vld [vmem:[#allocation8] sm:$0x1]
    %v198 = vperm.slane %v196, 0
    %200 = vmatpush.msra.mxu0 %v195
    %201 = vmatpush.msra.mxu0 %v194
    %202 = vmatpush.msra.mxu0 %v193
    %203 = vmatpush.msra.mxu0 %v192
    %204 = vmatpush.msra.mxu0 %v191
    %205 = vmatpush.msra.mxu0 %v190
    %206 = vmatpush.msra.mxu0 %v189
    %207 = vmatpush.msra.mxu0 %v188
    %208 = vmatpush.msra.mxu0 %v187
    %209 = vmatpush.msra.mxu0 %v186
    %210 = vmatpush.msra.mxu0 %v185
    %211 = vmatpush.msra.mxu0 %v184
    %212 = vmatpush.msra.mxu0 %v183
    %213 = vmatpush.msra.mxu0 %v182
    %214 = vmatpush.msra.mxu0 %v181
    %215 = vmatpush.msra.mxu0 %v180
    %216 = vmatmul.f32.gmra.mxu0 %v179
    %v217 = vpop.f32.mrf.mxu0
    %v218 = vadd.f32 %v198, %v217
    %219 = vdwg.mxu0
    %v220 = vmax.f32 %v218, 0.0
    %v221 = vld [vmem:[#allocation10] sm:$0xff]
    %v222 = vld [vmem:[#allocation10 + $0x8] sm:$0xff]
    %v223 = vld [vmem:[#allocation10 + $0x10] sm:$0xff]
    %v224 = vld [vmem:[#allocation10 + $0x18] sm:$0xff]
    %v225 = vld [vmem:[#allocation10 + $0x20] sm:$0xff]
    %v226 = vld [vmem:[#allocation10 + $0x28] sm:$0xff]
    %v227 = vld [vmem:[#allocation10 + $0x30] sm:$0xff]
    %v228 = vld [vmem:[#allocation10 + $0x38] sm:$0xff]
    %v229 = vld [vmem:[#allocation10 + $0x40] sm:$0xff]
    %v230 = vld [vmem:[#allocation10 + $0x48] sm:$0xff]
    %v231 = vld [vmem:[#allocation10 + $0x50] sm:$0xff]
    %v232 = vld [vmem:[#allocation10 + $0x58] sm:$0xff]
    %v233 = vld [vmem:[#allocation10 + $0x60] sm:$0xff]
    %v234 = vld [vmem:[#allocation10 + $0x68] sm:$0xff]
    %v235 = vld [vmem:[#allocation10 + $0x70] sm:$0xff]
    %v236 = vld [vmem:[#allocation10 + $0x78] sm:$0xff]
    %v237 = vld [vmem:[#allocation10 + $0x80] sm:$0xff]
    %v238 = vld [vmem:[#allocation10 + $0x88] sm:$0xff]
    %v239 = vld [vmem:[#allocation10 + $0x90] sm:$0xff]
    %v240 = vld [vmem:[#allocation10 + $0x98] sm:$0xff]
    %v241 = vld [vmem:[#allocation10 + $0xa0] sm:$0xff]
    %v242 = vld [vmem:[#allocation10 + $0xa8] sm:$0xff]
    %v243 = vld [vmem:[#allocation10 + $0xb0] sm:$0xff]
    %v244 = vld [vmem:[#allocation10 + $0xb8] sm:$0xff]
    %v245 = vld [vmem:[#allocation10 + $0xc0] sm:$0xff]
    %v246 = vld [vmem:[#allocation10 + $0xc8] sm:$0xff]
    %v247 = vld [vmem:[#allocation10 + $0xd0] sm:$0xff]
    %v248 = vld [vmem:[#allocation10 + $0xd8] sm:$0xff]
    %v249 = vld [vmem:[#allocation10 + $0xe0] sm:$0xff]
    %v250 = vld [vmem:[#allocation10 + $0xe8] sm:$0xff]
    %v251 = vld [vmem:[#allocation10 + $0xf0] sm:$0xff]
    %v252 = vld [vmem:[#allocation10 + $0xf8] sm:$0xff]
    %v253 = vld [vmem:[%s6] sm:$0x3]
    %v255 = vperm.slane %v253, 0
    %v256 = vperm.slane %v253, 1
    %259 = vmatpush.msra.mxu0 %v251
    %260 = vmatpush.msra.mxu0 %v249
    %261 = vmatpush.msra.mxu0 %v247
    %262 = vmatpush.msra.mxu0 %v245
    %263 = vmatpush.msra.mxu0 %v243
    %264 = vmatpush.msra.mxu0 %v241
    %265 = vmatpush.msra.mxu0 %v239
    %266 = vmatpush.msra.mxu0 %v237
    %267 = vmatpush.msra.mxu0 %v235
    %268 = vmatpush.msra.mxu0 %v233
    %269 = vmatpush.msra.mxu0 %v231
    %270 = vmatpush.msra.mxu0 %v229
    %271 = vmatpush.msra.mxu0 %v227
    %272 = vmatpush.msra.mxu0 %v225
    %273 = vmatpush.msra.mxu0 %v223
    %274 = vmatpush.msra.mxu0 %v221
    %275 = vmatmul.f32.gmra.mxu0 %v220
    %v276 = vpop.f32.mrf.mxu0
    %v277 = vadd.f32 %v255, %v276
    %278 = vdwg.mxu0
    %279 = vmatpush.msra.mxu0 %v252
    %280 = vmatpush.msra.mxu0 %v250
    %281 = vmatpush.msra.mxu0 %v248
    %282 = vmatpush.msra.mxu0 %v246
    %283 = vmatpush.msra.mxu0 %v244
    %284 = vmatpush.msra.mxu0 %v242
    %285 = vmatpush.msra.mxu0 %v240
    %286 = vmatpush.msra.mxu0 %v238
    %287 = vmatpush.msra.mxu0 %v236
    %288 = vmatpush.msra.mxu0 %v234
    %289 = vmatpush.msra.mxu0 %v232
    %290 = vmatpush.msra.mxu0 %v230
    %291 = vmatpush.msra.mxu0 %v228
    %292 = vmatpush.msra.mxu0 %v226
    %293 = vmatpush.msra.mxu0 %v224
    %294 = vmatpush.msra.mxu0 %v222
    %295 = vmatmul.f32.gmra.mxu0 %v220
    %v296 = vpop.f32.mrf.mxu0
    %v297 = vadd.f32 %v256, %v296
    %298 = vdwg.mxu0
    %v299 = vmax.f32 %v277, %v297
    %300 = vmax.xlane.f32.xlu0 %v299
    %v301 = vpop.xlane.xlu0 %300
    %v302 = vsub.f32 %v277, %v301
    %v303 = vsub.f32 %v297, %v301
    %v304 = vmul.f32 %v302, 1.442695
    %v305 = vpow.pop %v304
    %v306 = vmul.f32 %v303, 1.442695
    %v307 = vpow.pop %v306
    %v308 = vadd.f32 %v305, %v307
    %309 = vadd.xlane.f32.xlu0 %v308
    %v310 = vpop.xlane.xlu0 %309
    %v311 = vlog2.pop %v310
    %v312 = vmul.f32 %v311, 0.6931472
    %v313 = vsub.f32 %v302, %v312
    %v314 = vsub.f32 %v303, %v312
    %315 = vst [vmem:[#allocation11] sm:$0xff] %v313
    %316 = vst [vmem:[#allocation11 + $0x8] sm:$0xff] %v314
    // Predicated region
    $region50: #{tpu_custom_call.1} parent=1 // pred_check
      _
    $region51: #{tpu_custom_call.1} parent=1 // pred_check_branch
      %318 = sbr.rel (0) target = $region53
    $region52: #{tpu_custom_call.1} parent=1 // pred_region
      %320 = vsyncadd [#allocation4], 0
      %s322 = sshll.u32 [#allocation11], 4
      %s323 = int_to_ptr.vmem [resolvable:$true] %s322
      %s324 = sshll.u32 %s7, 4
      %s325 = int_to_ptr.hbm [resolvable:$true] %s324
      %327 = dma.vmem_to_hbm [thread:$0]  %s323, 256, %s325, [#allocation4]
    $region53: #{tpu_custom_call.1} parent=1 // pred_fallthru
      _
    // Predicated region
    $region54: #{tpu_custom_call.1} parent=1 // pred_check
      _
    $region55: #{tpu_custom_call.1} parent=1 // pred_check_branch
      %329 = sbr.rel (0) target = $region57
    $region56: #{tpu_custom_call.1} parent=1 // pred_region
      %331 = dma.done [#allocation4], 256
    $region57: #{tpu_custom_call.1} parent=1 // pred_fallthru
      _
    %332 = vsyncpa [#allocation3], 1
    %333 = vsyncpa [#allocation6], 1
    %334 = vsyncpa [#allocation9], 1
    %335 = vsyncpa [#allocation4], 1

</llo_original>
